<compile_context>
chip_gen: v7x
topology: tpu7x:2x2x1
jax: 0.10.0
libtpu: 0.0.40
codegen_flags: <defaults>
</compile_context>

<pallas_src>
import jax
import jax.numpy as jnp
from jax.experimental import pallas as pl
from jax.experimental.pallas import tpu as pltpu


def attention_kernel(enc_ref, hid_ref, w1_ref, w2_ref, small_ref,
                     ctx_ref, attw_ref):
    # enc_ref  : [bb, P, E]   batch block of encoder features
    # hid_ref  : [bb, D]      batch block of previous hidden states
    # w1_ref   : [E, A]
    # w2_ref   : [D, A]
    # small_ref: [3, A]       row 0 = b1, row 1 = b2, row 2 = w3^T  (b3 dropped)
    bb, P, E = enc_ref.shape
    A = w1_ref.shape[1]

    enc = enc_ref[...]                               # [bb, P, E]
    hid = hid_ref[...]                               # [bb, D]
    b1 = small_ref[0:1, :]                           # [1, A]
    b2 = small_ref[1:2, :]                           # [1, A]
    w3r = small_ref[2:3, :]                          # [1, A]

    # fc1 over all bb*P rows in a single MXU matmul (M = bb*P).
    e = jnp.dot(enc.reshape(bb * P, E), w1_ref[...],
                preferred_element_type=jnp.float32) + b1         # [bb*P, A]
    # fc2 over the whole batch of hidden states at once.
    h = jnp.dot(hid, w2_ref[...],
                preferred_element_type=jnp.float32) + b2         # [bb, A]

    t = jnp.tanh(e.reshape(bb, P, A) + h[:, None, :])            # [bb, P, A]

    # fc3 (N=1 matmul) as VPU multiply + lane reduce -> scores in [bb, P] layout.
    # The b3 bias is omitted: adding a constant is a no-op under softmax.
    scores = jnp.sum(t * w3r, axis=-1)                           # [bb, P]

    # Softmax over num_pixels (lane axis -> lane reductions, no transposes).
    m = jnp.max(scores, axis=-1, keepdims=True)                  # [bb, 1]
    p = jnp.exp(scores - m)
    w = p * pl.reciprocal(jnp.sum(p, axis=-1, keepdims=True),
                          approx=False)                          # [bb, P]

    # context_vector = sum_p w[b,p] * enc[b,p,:]  as a batched MXU matmul.
    ctx = jnp.einsum("bqp,bpe->bqe", w[:, None, :], enc,
                     preferred_element_type=jnp.float32)         # [bb, 1, E]

    ctx_ref[...] = ctx.astype(ctx_ref.dtype)                     # [bb, 1, E]
    attw_ref[...] = w.astype(attw_ref.dtype)                     # [bb, P] lane-dense


def attention_forward(enc_features, prev_hidden, params, *, batch_block=None):
    """enc_features: [bs, P, E] f32; prev_hidden: [bs, D] f32.
    Returns (context_vector [bs, E], atten_weights [bs, P])."""
    bs, P, E = enc_features.shape
    D = prev_hidden.shape[1]
    A = params["w1"].shape[1]

    # Whole batch in one program by default. On v7x prefer batch_block = bs/2 so
    # the two TensorCores each take half the batch; for large real-world shapes
    # re-derive the block against VMEM (set vmem_limit_bytes if raising it).
    bb = bs if batch_block is None else batch_block
    assert bs % bb == 0, "batch_block must divide the batch size"
    nb = bs // bb

    w1, w2 = params["w1"], params["w2"]                          # [E, A], [D, A]
    # Pack the two biases and w3^T into one small block (b3 is dropped: it only
    # shifts the pre-softmax scores by a constant, which softmax cancels).
    small = jnp.concatenate(
        [params["b1"], params["b2"], params["w3"].T], axis=0)    # [3, A]

    grid_spec = pltpu.PrefetchScalarGridSpec(
        num_scalar_prefetch=0,
        grid=(nb,),
        in_specs=[
            pl.BlockSpec((bb, P, E), lambda b: (b, 0, 0)),       # enc_features
            pl.BlockSpec((bb, D), lambda b: (b, 0)),             # prev_hidden
            pl.BlockSpec((E, A), lambda b: (0, 0)),              # w1 (resident)
            pl.BlockSpec((D, A), lambda b: (0, 0)),              # w2 (resident)
            pl.BlockSpec((3, A), lambda b: (0, 0)),              # [b1; b2; w3^T]
        ],
        out_specs=[
            pl.BlockSpec((bb, 1, E), lambda b: (b, 0, 0)),       # context (pre-squeeze)
            pl.BlockSpec((bb, P), lambda b: (b, 0)),             # atten_weights
        ],
    )

    ctx3, attw = pl.pallas_call(
        attention_kernel,
        out_shape=(
            jax.ShapeDtypeStruct((bs, 1, E), jnp.float32),
            jax.ShapeDtypeStruct((bs, P), jnp.float32),
        ),
        grid_spec=grid_spec,
        compiler_params=pltpu.CompilerParams(
            dimension_semantics=("parallel",)),
    )(enc_features, prev_hidden, w1, w2, small)
    return ctx3.reshape(bs, E), attw


def make_params(key, encoder_dim, decoder_dim, attention_dim):
    """Deterministic synthetic Linear parameters; stored as [in, out]."""
    k = jax.random.split(key, 6)
    scale = 0.1
    return {
        "w1": scale * jax.random.normal(k[0], (encoder_dim, attention_dim), jnp.float32),
        "b1": scale * jax.random.normal(k[1], (1, attention_dim), jnp.float32),
        "w2": scale * jax.random.normal(k[2], (decoder_dim, attention_dim), jnp.float32),
        "b2": scale * jax.random.normal(k[3], (1, attention_dim), jnp.float32),
        "w3": scale * jax.random.normal(k[4], (attention_dim, 1), jnp.float32),
        "b3": scale * jax.random.normal(k[5], (1, 1), jnp.float32),
    }


def attention_ref(enc_features, prev_hidden, params):
    """Pure-JAX reference mirroring the PyTorch forward (b3 kept; softmax cancels it)."""
    e = enc_features @ params["w1"] + params["b1"]               # [bs, P, A]
    h = (prev_hidden @ params["w2"] + params["b2"])[:, None, :]  # [bs, 1, A]
    s = jnp.tanh(e + h) @ params["w3"] + params["b3"]            # [bs, P, 1]
    w = jax.nn.softmax(s, axis=1)                                # [bs, P, 1]
    ctx = jnp.sum(enc_features * w, axis=1)                      # [bs, E]
    return ctx, w[..., 0]


if __name__ == "__main__":
    # cfg: encoder_dim = 32, decoder_dim = 32, attention_dim = 32
    bs, num_pixels = 2, 16
    encoder_dim, decoder_dim, attention_dim = 32, 32, 32

    key = jax.random.PRNGKey(0)
    k_enc, k_hid, k_par = jax.random.split(key, 3)
    enc_features = jax.random.normal(k_enc, (bs, num_pixels, encoder_dim), jnp.float32)
    prev_hidden = jax.random.normal(k_hid, (bs, decoder_dim), jnp.float32)
    params = make_params(k_par, encoder_dim, decoder_dim, attention_dim)

    ctx, attw = attention_forward(enc_features, prev_hidden, params)
    ctx = jax.block_until_ready(ctx)
    attw = jax.block_until_ready(attw)

    ctx_ref, attw_ref = attention_ref(enc_features, prev_hidden, params)
    assert ctx.shape == (bs, encoder_dim)
    assert attw.shape == (bs, num_pixels)
    assert jnp.allclose(ctx, ctx_ref, atol=1e-5, rtol=1e-5)
    assert jnp.allclose(attw, attw_ref, atol=1e-5, rtol=1e-5)

    print("KERNEL_OK")
</pallas_src>

<mosaic_0001>
module attributes {stable_mosaic.version = 11 : i64} {
  func.func @attention_kernel(%arg0: i32, %arg1: memref<2x16x32xf32, #tpu.memory_space<vmem>>, %arg2: memref<2x32xf32, #tpu.memory_space<vmem>>, %arg3: memref<32x32xf32, #tpu.memory_space<vmem>>, %arg4: memref<32x32xf32, #tpu.memory_space<vmem>>, %arg5: memref<3x32xf32, #tpu.memory_space<vmem>>, %arg6: memref<2x1x32xf32, #tpu.memory_space<vmem>>, %arg7: memref<2x16xf32, #tpu.memory_space<vmem>>) attributes {dimension_semantics = [#tpu.dimension_semantics<parallel>], iteration_bounds = array<i64: 1>, scalar_prefetch = 0 : i64, scratch_operands = 0 : i64, tpu.core_type = #tpu.core_type<tc>, window_params = [{transform_indices = @transform_0, window_bounds = array<i64: 2, 16, 32>}, {transform_indices = @transform_1, window_bounds = array<i64: 2, 32>}, {pipeline_mode = #tpu.pipeline_mode<synchronous>, transform_indices = @transform_2, window_bounds = array<i64: 32, 32>}, {pipeline_mode = #tpu.pipeline_mode<synchronous>, transform_indices = @transform_3, window_bounds = array<i64: 32, 32>}, {pipeline_mode = #tpu.pipeline_mode<synchronous>, transform_indices = @transform_4, window_bounds = array<i64: 3, 32>}, {transform_indices = @transform_5, window_bounds = array<i64: 2, 1, 32>}, {transform_indices = @transform_6, window_bounds = array<i64: 2, 16>}]} {
    %c0 = arith.constant 0 : index
    %c0_0 = arith.constant 0 : index
    %c0_1 = arith.constant 0 : index
    %0 = vector.load %arg1[%c0, %c0_0, %c0_1] : memref<2x16x32xf32, #tpu.memory_space<vmem>>, vector<2x16x32xf32>
    %c0_2 = arith.constant 0 : index
    %c0_3 = arith.constant 0 : index
    %1 = vector.load %arg2[%c0_2, %c0_3] : memref<2x32xf32, #tpu.memory_space<vmem>>, vector<2x32xf32>
    %c0_4 = arith.constant 0 : index
    %c0_5 = arith.constant 0 : index
    %2 = vector.load %arg5[%c0_4, %c0_5] : memref<3x32xf32, #tpu.memory_space<vmem>>, vector<1x32xf32>
    %c1 = arith.constant 1 : index
    %c0_6 = arith.constant 0 : index
    %3 = vector.load %arg5[%c1, %c0_6] : memref<3x32xf32, #tpu.memory_space<vmem>>, vector<1x32xf32>
    %c2 = arith.constant 2 : index
    %c0_7 = arith.constant 0 : index
    %4 = vector.load %arg5[%c2, %c0_7] : memref<3x32xf32, #tpu.memory_space<vmem>>, vector<1x32xf32>
    %5 = vector.shape_cast %0 : vector<2x16x32xf32> to vector<32x32xf32>
    %c0_8 = arith.constant 0 : index
    %c0_9 = arith.constant 0 : index
    %6 = vector.load %arg3[%c0_8, %c0_9] : memref<32x32xf32, #tpu.memory_space<vmem>>, vector<32x32xf32>
    %cst = arith.constant dense<0.000000e+00> : vector<32x32xf32>
    %7 = tpu.matmul %5, %6, %cst {dimension_numbers = #tpu.dot_dimension_numbers<[1], [0], [0], [1], [0, 0, 1, 1], [], []>} : vector<32x32xf32>, vector<32x32xf32>, vector<32x32xf32> -> vector<32x32xf32>
    %8 = vector.broadcast %2 : vector<1x32xf32> to vector<32x32xf32>
    %9 = arith.addf %7, %8 : vector<32x32xf32>
    %c0_10 = arith.constant 0 : index
    %c0_11 = arith.constant 0 : index
    %10 = vector.load %arg4[%c0_10, %c0_11] : memref<32x32xf32, #tpu.memory_space<vmem>>, vector<32x32xf32>
    %cst_12 = arith.constant dense<0.000000e+00> : vector<2x32xf32>
    %11 = tpu.matmul %1, %10, %cst_12 {dimension_numbers = #tpu.dot_dimension_numbers<[1], [0], [0], [1], [0, 0, 1, 1], [], []>} : vector<2x32xf32>, vector<32x32xf32>, vector<2x32xf32> -> vector<2x32xf32>
    %12 = vector.broadcast %3 : vector<1x32xf32> to vector<2x32xf32>
    %13 = arith.addf %11, %12 : vector<2x32xf32>
    %14 = vector.shape_cast %9 : vector<32x32xf32> to vector<2x16x32xf32>
    %15 = vector.shape_cast %13 : vector<2x32xf32> to vector<2x1x32xf32>
    %16 = vector.broadcast %15 : vector<2x1x32xf32> to vector<2x16x32xf32>
    %17 = arith.addf %14, %16 : vector<2x16x32xf32>
    %18 = math.tanh %17 : vector<2x16x32xf32>
    %19 = vector.shape_cast %4 : vector<1x32xf32> to vector<1x1x32xf32>
    %20 = vector.broadcast %19 : vector<1x1x32xf32> to vector<2x16x32xf32>
    %21 = arith.mulf %18, %20 : vector<2x16x32xf32>
    %cst_13 = arith.constant dense<0.000000e+00> : vector<2x16xf32>
    %22 = vector.multi_reduction <add>, %21, %cst_13 [2] : vector<2x16x32xf32> to vector<2x16xf32>
    %cst_14 = arith.constant dense<0xFF800000> : vector<2xf32>
    %23 = vector.multi_reduction <maximumf>, %22, %cst_14 [1] : vector<2x16xf32> to vector<2xf32>
    %24 = vector.shape_cast %23 : vector<2xf32> to vector<2x1xf32>
    %25 = vector.broadcast %24 : vector<2x1xf32> to vector<2x16xf32>
    %26 = arith.subf %22, %25 : vector<2x16xf32>
    %27 = math.exp %26 : vector<2x16xf32>
    %cst_15 = arith.constant dense<0.000000e+00> : vector<2xf32>
    %28 = vector.multi_reduction <add>, %27, %cst_15 [1] : vector<2x16xf32> to vector<2xf32>
    %29 = vector.shape_cast %28 : vector<2xf32> to vector<2x1xf32>
    %30 = tpu.reciprocal %29 : vector<2x1xf32> -> vector<2x1xf32>
    %31 = vector.broadcast %30 : vector<2x1xf32> to vector<2x16xf32>
    %32 = arith.mulf %27, %31 : vector<2x16xf32>
    %33 = vector.shape_cast %32 : vector<2x16xf32> to vector<2x1x16xf32>
    "tpu.trace_start"() <{level = 10 : i32, message = "bqp,bpe->bqe"}> : () -> ()
    %cst_16 = arith.constant dense<0.000000e+00> : vector<2x1x32xf32>
    %34 = tpu.matmul %33, %0, %cst_16 {dimension_numbers = #tpu.dot_dimension_numbers<[2], [1], [1], [2], [0, 0, 0, 1, 1, 2], [0], [0]>} : vector<2x1x16xf32>, vector<2x16x32xf32>, vector<2x1x32xf32> -> vector<2x1x32xf32>
    "tpu.trace_stop"() : () -> ()
    %c0_17 = arith.constant 0 : index
    %c0_18 = arith.constant 0 : index
    %c0_19 = arith.constant 0 : index
    %35 = vector.load %arg6[%c0_17, %c0_18, %c0_19] : memref<2x1x32xf32, #tpu.memory_space<vmem>>, vector<2x1x32xf32>
    tpu.vector_store %arg6[%c0_17, %c0_18, %c0_19], %34 {strides = array<i32>} : memref<2x1x32xf32, #tpu.memory_space<vmem>>, vector<2x1x32xf32>,
    %c0_20 = arith.constant 0 : index
    %c0_21 = arith.constant 0 : index
    %36 = vector.load %arg7[%c0_20, %c0_21] : memref<2x16xf32, #tpu.memory_space<vmem>>, vector<2x16xf32>
    tpu.vector_store %arg7[%c0_20, %c0_21], %32 {strides = array<i32>} : memref<2x16xf32, #tpu.memory_space<vmem>>, vector<2x16xf32>,
    return
  }
  func.func @transform_0(%arg0: i32) -> (i32, i32, i32) {
    %c0_i32 = arith.constant 0 : i32
    %c0_i32_0 = arith.constant 0 : i32
    %c0_i32_1 = arith.constant 0 : i32
    return %arg0, %c0_i32, %c0_i32_0 : i32, i32, i32
  }
  func.func @transform_1(%arg0: i32) -> (i32, i32) {
    %c0_i32 = arith.constant 0 : i32
    %c0_i32_0 = arith.constant 0 : i32
    return %arg0, %c0_i32 : i32, i32
  }
  func.func @transform_2(%arg0: i32) -> (i32, i32) {
    %c0_i32 = arith.constant 0 : i32
    %c0_i32_0 = arith.constant 0 : i32
    %c0_i32_1 = arith.constant 0 : i32
    return %c0_i32, %c0_i32_0 : i32, i32
  }
  func.func @transform_3(%arg0: i32) -> (i32, i32) {
    %c0_i32 = arith.constant 0 : i32
    %c0_i32_0 = arith.constant 0 : i32
    %c0_i32_1 = arith.constant 0 : i32
    return %c0_i32, %c0_i32_0 : i32, i32
  }
  func.func @transform_4(%arg0: i32) -> (i32, i32) {
    %c0_i32 = arith.constant 0 : i32
    %c0_i32_0 = arith.constant 0 : i32
    %c0_i32_1 = arith.constant 0 : i32
    return %c0_i32, %c0_i32_0 : i32, i32
  }
  func.func @transform_5(%arg0: i32) -> (i32, i32, i32) {
    %c0_i32 = arith.constant 0 : i32
    %c0_i32_0 = arith.constant 0 : i32
    %c0_i32_1 = arith.constant 0 : i32
    return %arg0, %c0_i32, %c0_i32_0 : i32, i32, i32
  }
  func.func @transform_6(%arg0: i32) -> (i32, i32) {
    %c0_i32 = arith.constant 0 : i32
    %c0_i32_0 = arith.constant 0 : i32
    return %arg0, %c0_i32 : i32, i32
  }
}

</mosaic_0001>

<llo_original>
// kernel: tpu_custom_call.1
$region0: #{tpu_custom_call.1}
  #allocation0 [shape = 'u32[]', space=smem, size = 0x4, offset = 0x4, fixed_abs, tag = 'smem constant byte address 0x4 - core index']
  #allocation1 [shape = 'u32[144,128]{1,0:T(1,128)}', space=vmem, size = 0x12000, scoped, tag = 'internal scratch']
  %s0 = inlined_call_operand.hbm [shape: f32[2,16,32], index: 0, kind: input, shape index: {}]
  %s1 = inlined_call_operand.vmem [shape: f32[2,32], index: 1, kind: input, shape index: {}]
  %s2 = inlined_call_operand.hbm [shape: f32[32,32], index: 2, kind: input, shape index: {}]
  %s3 = inlined_call_operand.hbm [shape: f32[32,32], index: 3, kind: input, shape index: {}]
  %s4 = inlined_call_operand.vmem [shape: f32[3,32], index: 4, kind: input, shape index: {}]
  %s5 = inlined_call_operand.hbm [shape: f32[2,1,32], index: 5, kind: output, shape index: {0}]
  %s6 = inlined_call_operand.hbm [shape: f32[2,16], index: 6, kind: output, shape index: {1}]
  %7 = xla_tuple %s5, %s6
  %s8 = sld [smem:[#allocation0]]
  $region50: #{tpu_custom_call.1} parent=0
    _
  %s10 = ssub.s32 1, %s8
  %s11 = scalar_select 0, %s10, %s8
  $region1: #{tpu_custom_call.1} parent=0
    #allocation2 [shape = 'u8[16384]{0}', space=vmem, size = 0x4000, scoped, tag = 'input window, operand 0, single buffered']
    #allocation3 [shape = 's32[1]{0}', space=sflag, size = 0x4, scoped, tag = 'scoped memory for tpu_custom_call.1']
    #allocation4 [shape = 's32[1]{0}', space=sflag, size = 0x4, scoped, tag = 'scoped memory for tpu_custom_call.1']
    #allocation5 [shape = 'u8[16384]{0}', space=vmem, size = 0x4000, scoped, tag = 'input window, operand 2, single buffered']
    #allocation6 [shape = 's32[1]{0}', space=sflag, size = 0x4, scoped, tag = 'scoped memory for tpu_custom_call.1']
    #allocation7 [shape = 'u8[16384]{0}', space=vmem, size = 0x4000, scoped, tag = 'input window, operand 3, single buffered']
    #allocation8 [shape = 'u8[1024]{0}', space=vmem, size = 0x400, scoped, tag = 'output window, operand 0, single buffered']
    #allocation9 [shape = 'u8[1024]{0}', space=vmem, size = 0x400, scoped, tag = 'output window, operand 1, single buffered']
    #allocation10 [shape = 's32[1]{0}', space=sflag, size = 0x4, scoped, tag = 'scoped memory for tpu_custom_call.1']
    %12 = vsyncpa [#allocation3], 0
    %13 = vsyncpa [#allocation6], 0
    %14 = vsyncpa [#allocation4], 0
    %15 = vsyncpa [#allocation10], 0
    // Predicated region
    $region2: #{tpu_custom_call.1} parent=1 // pred_check
      _
    $region3: #{tpu_custom_call.1} parent=1 // pred_check_branch
      %17 = sbr.rel (0) target = $region5
    $region4: #{tpu_custom_call.1} parent=1 // pred_region
      %s19 = ssub.s32 512, 512
      %20 = vsyncadd [#allocation3], %s19
      %s21 = sshll.u32 [#allocation2], 4
      %s22 = int_to_ptr.vmem [resolvable:$true] %s21
      %27 = dma.hbm_to_vmem [thread:$0]  %s0, 512, %s22, [#allocation3], 128, 128, 8
    $region5: #{tpu_custom_call.1} parent=1 // pred_fallthru
      _
    // Predicated region
    $region6: #{tpu_custom_call.1} parent=1 // pred_check
      _
    $region7: #{tpu_custom_call.1} parent=1 // pred_check_branch
      %29 = sbr.rel (0) target = $region9
    $region8: #{tpu_custom_call.1} parent=1 // pred_region
      _
    $region9: #{tpu_custom_call.1} parent=1 // pred_fallthru
      _
    // Predicated region
    $region10: #{tpu_custom_call.1} parent=1 // pred_check
      _
    $region11: #{tpu_custom_call.1} parent=1 // pred_check_branch
      %31 = sbr.rel (0) target = $region13
    $region12: #{tpu_custom_call.1} parent=1 // pred_region
      %s33 = ssub.s32 512, 512
      %34 = vsyncadd [#allocation6], %s33
      %s35 = sshll.u32 [#allocation5], 4
      %s36 = int_to_ptr.vmem [resolvable:$true] %s35
      %41 = dma.hbm_to_vmem [thread:$0]  %s2, 512, %s36, [#allocation6], 128, 128, 8
    $region13: #{tpu_custom_call.1} parent=1 // pred_fallthru
      _
    // Predicated region
    $region14: #{tpu_custom_call.1} parent=1 // pred_check
      _
    $region15: #{tpu_custom_call.1} parent=1 // pred_check_branch
      %43 = sbr.rel (0) target = $region17
    $region16: #{tpu_custom_call.1} parent=1 // pred_region
      %s45 = ssub.s32 512, 512
      %46 = vsyncadd [#allocation6], %s45
      %s47 = sshll.u32 [#allocation7], 4
      %s48 = int_to_ptr.vmem [resolvable:$true] %s47
      %53 = dma.hbm_to_vmem [thread:$0]  %s3, 512, %s48, [#allocation6], 128, 128, 8
    $region17: #{tpu_custom_call.1} parent=1 // pred_fallthru
      _
    // Predicated region
    $region18: #{tpu_custom_call.1} parent=1 // pred_check
      _
    $region19: #{tpu_custom_call.1} parent=1 // pred_check_branch
      %55 = sbr.rel (0) target = $region21
    $region20: #{tpu_custom_call.1} parent=1 // pred_region
      _
    $region21: #{tpu_custom_call.1} parent=1 // pred_fallthru
      _
    // Predicated region
    $region22: #{tpu_custom_call.1} parent=1 // pred_check
      _
    $region23: #{tpu_custom_call.1} parent=1 // pred_check_branch
      %57 = sbr.rel (0) target = $region25
    $region24: #{tpu_custom_call.1} parent=1 // pred_region
      %58 = dma.done [#allocation3], 512
    $region25: #{tpu_custom_call.1} parent=1 // pred_fallthru
      _
    // Predicated region
    $region26: #{tpu_custom_call.1} parent=1 // pred_check
      _
    $region27: #{tpu_custom_call.1} parent=1 // pred_check_branch
      %60 = sbr.rel (0) target = $region29
    $region28: #{tpu_custom_call.1} parent=1 // pred_region
      %61 = dma.done [#allocation6], 512
    $region29: #{tpu_custom_call.1} parent=1 // pred_fallthru
      _
    // Predicated region
    $region30: #{tpu_custom_call.1} parent=1 // pred_check
      _
    $region31: #{tpu_custom_call.1} parent=1 // pred_check_branch
      %63 = sbr.rel (0) target = $region33
    $region32: #{tpu_custom_call.1} parent=1 // pred_region
      %64 = dma.done [#allocation6], 512
    $region33: #{tpu_custom_call.1} parent=1 // pred_fallthru
      _
    %v65 = vld [vmem:[#allocation2] sm:$0xff]
    %v66 = vld [vmem:[#allocation2 + $0x8] sm:$0xff]
    %v67 = vld [vmem:[#allocation2 + $0x10] sm:$0xff]
    %v68 = vld [vmem:[#allocation2 + $0x18] sm:$0xff]
    %v69 = vld [vmem:[%s1] sm:$0x3]
    %v70 = vld [vmem:[%s4] sm:$0x1]
    %v71 = vld [vmem:[%s4 + $0x1] sm:$0x1]
    %v72 = vld [vmem:[%s4 + $0x2] sm:$0x1]
    %v73 = vld [vmem:[#allocation5] sm:$0xff]
    %v74 = vld [vmem:[#allocation5 + $0x8] sm:$0xff]
    %v75 = vld [vmem:[#allocation5 + $0x10] sm:$0xff]
    %v76 = vld [vmem:[#allocation5 + $0x18] sm:$0xff]
    %v77 = vlaneseq
    %v78 = vshrl.u32 %v77, 7
    %v79 = vsub.s32 0, %v78
    %v80 = vrot.slane %v70, %v79
    %vm81 = vcmask 261120
    %v83 = vsel %vm81, %v65, 0
    %v86 = vsel %vm81, %v66, 0
    %v89 = vsel %vm81, %v67, 0
    %v92 = vsel %vm81, %v68, 0
    %94 = vmatprep.subr.mxu0 0.0
    %95 = vmatpush1.msra.mxu0 %v73
    %96 = vmatprep.subr.mxu0 0.0
    %97 = vmatpush1.msra.mxu0 %v74
    %98 = vmatprep.subr.mxu0 0.0
    %99 = vmatpush1.msra.mxu0 %v75
    %100 = vmatprep.subr.mxu0 0.0
    %101 = vmatpush1.msra.mxu0 %v76
    %102 = vmatprep.subr.mxu0 0.0
    %103 = vmatpush1.msra.mxu0 0.0
    %104 = vmatprep.subr.mxu0 0.0
    %105 = vmatpush1.msra.mxu0 0.0
    %106 = vmatprep.subr.mxu0 0.0
    %107 = vmatpush1.msra.mxu0 0.0
    %108 = vmatprep.subr.mxu0 0.0
    %109 = vmatpush1.msra.mxu0 0.0
    %110 = vmatprep.subr.mxu0 0.0
    %111 = vmatpush1.msra.mxu0 0.0
    %112 = vmatprep.subr.mxu0 0.0
    %113 = vmatpush1.msra.mxu0 0.0
    %114 = vmatprep.subr.mxu0 0.0
    %115 = vmatpush1.msra.mxu0 0.0
    %116 = vmatprep.subr.mxu0 0.0
    %117 = vmatpush1.msra.mxu0 0.0
    %118 = vmatprep.subr.mxu0 0.0
    %119 = vmatpush1.msra.mxu0 0.0
    %120 = vmatprep.subr.mxu0 0.0
    %121 = vmatpush1.msra.mxu0 0.0
    %122 = vmatprep.subr.mxu0 0.0
    %123 = vmatpush1.msra.mxu0 0.0
    %124 = vmatprep.subr.mxu0 0.0
    %125 = vmatpush1.msra.mxu0 0.0
    %126 = vmatprep.subr.mxu0 0.0
    %127 = vmatpush1.msra.mxu0 0.0
    %128 = vmatprep.subr.mxu0 0.0
    %129 = vmatpush1.msra.mxu0 0.0
    %130 = vmatprep.subr.mxu0 0.0
    %131 = vmatpush1.msra.mxu0 0.0
    %132 = vmatprep.subr.mxu0 0.0
    %133 = vmatpush1.msra.mxu0 0.0
    %134 = vmatprep.subr.mxu0 0.0
    %135 = vmatpush1.msra.mxu0 0.0
    %136 = vmatprep.subr.mxu0 0.0
    %137 = vmatpush1.msra.mxu0 0.0
    %138 = vmatprep.subr.mxu0 0.0
    %139 = vmatpush1.msra.mxu0 0.0
    %140 = vmatprep.subr.mxu0 0.0
    %141 = vmatpush1.msra.mxu0 0.0
    %142 = vmatprep.subr.mxu0 0.0
    %143 = vmatpush1.msra.mxu0 0.0
    %144 = vmatprep.subr.mxu0 0.0
    %145 = vmatpush1.msra.mxu0 0.0
    %146 = vmatprep.subr.mxu0 0.0
    %147 = vmatpush1.msra.mxu0 0.0
    %148 = vmatprep.subr.mxu0 0.0
    %149 = vmatpush1.msra.mxu0 0.0
    %150 = vmatprep.subr.mxu0 0.0
    %151 = vmatpush1.msra.mxu0 0.0
    %152 = vmatprep.subr.mxu0 0.0
    %153 = vmatpush1.msra.mxu0 0.0
    %154 = vmatprep.subr.mxu0 0.0
    %155 = vmatpush1.msra.mxu0 0.0
    %156 = vmatprep.subr.mxu0 0.0
    %157 = vmatpush1.msra.mxu0 0.0
    %158 = vmatprep.mubr.f32.mxu0 0.0
    %159 = vmatmul.mubr.f32.gmra.mrb[0].mxu0 %v83
    %v160 = vpop.f32.mrb[0].mxu0
    %v161 = vadd.f32 %v80, %v160
    %v162 = vpop.f32.mrb[0].mxu0
    %163 = vmatprep.mubr.f32.mxu0 0.0
    %164 = vmatmul.mubr.f32.gmra.mrb[0].mxu0 %v86
    %v165 = vpop.f32.mrb[0].mxu0
    %v166 = vadd.f32 %v80, %v165
    %v167 = vpop.f32.mrb[0].mxu0
    %168 = vmatprep.mubr.f32.mxu0 0.0
    %169 = vmatmul.mubr.f32.gmra.mrb[0].mxu0 %v89
    %v170 = vpop.f32.mrb[0].mxu0
    %v171 = vadd.f32 %v80, %v170
    %v172 = vpop.f32.mrb[0].mxu0
    %173 = vmatprep.mubr.f32.mxu0 0.0
    %174 = vmatmul.mubr.f32.gmra.mrb[0].mxu0 %v92
    %v175 = vpop.f32.mrb[0].mxu0
    %v176 = vadd.f32 %v80, %v175
    %v177 = vpop.f32.mrb[0].mxu0
    %178 = vdwg.mxu0
    %v179 = vld [vmem:[#allocation7] sm:$0xff]
    %v180 = vld [vmem:[#allocation7 + $0x8] sm:$0xff]
    %v181 = vld [vmem:[#allocation7 + $0x10] sm:$0xff]
    %v182 = vld [vmem:[#allocation7 + $0x18] sm:$0xff]
    %v183 = vlaneseq
    %v184 = vshrl.u32 %v183, 7
    %v185 = vsub.s32 0, %v184
    %v186 = vrot.slane %v71, %v185
    %v188 = vsel %vm81, %v69, 0
    %190 = vmatprep.subr.mxu0 0.0
    %191 = vmatpush1.msra.mxu0 %v179
    %192 = vmatprep.subr.mxu0 0.0
    %193 = vmatpush1.msra.mxu0 %v180
    %194 = vmatprep.subr.mxu0 0.0
    %195 = vmatpush1.msra.mxu0 %v181
    %196 = vmatprep.subr.mxu0 0.0
    %197 = vmatpush1.msra.mxu0 %v182
    %198 = vmatprep.subr.mxu0 0.0
    %199 = vmatpush1.msra.mxu0 0.0
    %200 = vmatprep.subr.mxu0 0.0
    %201 = vmatpush1.msra.mxu0 0.0
    %202 = vmatprep.subr.mxu0 0.0
    %203 = vmatpush1.msra.mxu0 0.0
    %204 = vmatprep.subr.mxu0 0.0
    %205 = vmatpush1.msra.mxu0 0.0
    %206 = vmatprep.subr.mxu0 0.0
    %207 = vmatpush1.msra.mxu0 0.0
    %208 = vmatprep.subr.mxu0 0.0
    %209 = vmatpush1.msra.mxu0 0.0
    %210 = vmatprep.subr.mxu0 0.0
    %211 = vmatpush1.msra.mxu0 0.0
    %212 = vmatprep.subr.mxu0 0.0
    %213 = vmatpush1.msra.mxu0 0.0
    %214 = vmatprep.subr.mxu0 0.0
    %215 = vmatpush1.msra.mxu0 0.0
    %216 = vmatprep.subr.mxu0 0.0
    %217 = vmatpush1.msra.mxu0 0.0
    %218 = vmatprep.subr.mxu0 0.0
    %219 = vmatpush1.msra.mxu0 0.0
    %220 = vmatprep.subr.mxu0 0.0
    %221 = vmatpush1.msra.mxu0 0.0
    %222 = vmatprep.subr.mxu0 0.0
    %223 = vmatpush1.msra.mxu0 0.0
    %224 = vmatprep.subr.mxu0 0.0
    %225 = vmatpush1.msra.mxu0 0.0
    %226 = vmatprep.subr.mxu0 0.0
    %227 = vmatpush1.msra.mxu0 0.0
    %228 = vmatprep.subr.mxu0 0.0
    %229 = vmatpush1.msra.mxu0 0.0
    %230 = vmatprep.subr.mxu0 0.0
    %231 = vmatpush1.msra.mxu0 0.0
    %232 = vmatprep.subr.mxu0 0.0
    %233 = vmatpush1.msra.mxu0 0.0
    %234 = vmatprep.subr.mxu0 0.0
    %235 = vmatpush1.msra.mxu0 0.0
    %236 = vmatprep.subr.mxu0 0.0
    %237 = vmatpush1.msra.mxu0 0.0
    %238 = vmatprep.subr.mxu0 0.0
    %239 = vmatpush1.msra.mxu0 0.0
    %240 = vmatprep.subr.mxu0 0.0
    %241 = vmatpush1.msra.mxu0 0.0
    %242 = vmatprep.subr.mxu0 0.0
    %243 = vmatpush1.msra.mxu0 0.0
    %244 = vmatprep.subr.mxu0 0.0
    %245 = vmatpush1.msra.mxu0 0.0
    %246 = vmatprep.subr.mxu0 0.0
    %247 = vmatpush1.msra.mxu0 0.0
    %248 = vmatprep.subr.mxu0 0.0
    %249 = vmatpush1.msra.mxu0 0.0
    %250 = vmatprep.subr.mxu0 0.0
    %251 = vmatpush1.msra.mxu0 0.0
    %252 = vmatprep.subr.mxu0 0.0
    %253 = vmatpush1.msra.mxu0 0.0
    %254 = vmatprep.mubr.f32.mxu0 0.0
    %255 = vmatmul.mubr.f32.gmra.mrb[0].mxu0 %v188
    %v256 = vpop.f32.mrb[0].mxu0
    %v257 = vadd.f32 %v186, %v256
    %v258 = vpop.f32.mrb[0].mxu0
    %259 = vdwg.mxu0
    %v262 = vunpack.c.l.s4 1966171168
    %v263 = vunpack.c.0.s8 %v262
    %v264 = vlaneseq
    %v265 = vshrl.u32 %v264, 7
    %v266 = vsub.s32 %v263, %v265
    %v267 = vrot.slane %v257, %v266
    %v268 = vcombine.high %v267, %v267
    %v270 = vunpack.c.l.s4 1966171168
    %v271 = vunpack.c.0.s8 %v270
    %v272 = vlaneseq
    %v273 = vshrl.u32 %v272, 7
    %v274 = vsub.s32 %v271, %v273
    %v275 = vrot.slane %v267, %v274
    %v277 = vunpack.c.l.s4 1966171168
    %v278 = vunpack.c.0.s8 %v277
    %v279 = vlaneseq
    %v280 = vshrl.u32 %v279, 7
    %v281 = vsub.s32 %v278, %v280
    %v282 = vrot.slane %v268, %v281
    %v283 = vlaneseq
    %v284 = vshrl.u32 %v283, 7
    %v285 = vsub.s32 0, %v284
    %v286 = vrot.slane %v275, %v285
    %v287 = vlaneseq
    %v288 = vshrl.u32 %v287, 7
    %v289 = vsub.s32 0, %v288
    %v290 = vrot.slane %v282, %v289
    %v293 = vadd.f32 %v161, %v286
    %v294 = vadd.f32 %v166, %v286
    %v295 = vadd.f32 %v171, %v290
    %v296 = vadd.f32 %v176, %v290
    %v297 = vtanh.pop %v293
    %v298 = vtanh.pop %v294
    %v299 = vtanh.pop %v295
    %v300 = vtanh.pop %v296
    %v301 = vlaneseq
    %v302 = vshrl.u32 %v301, 7
    %v303 = vsub.s32 0, %v302
    %v304 = vrot.slane %v72, %v303
    %v305 = vmul.f32 %v297, %v304
    %v306 = vmul.f32 %v298, %v304
    %v307 = vmul.f32 %v299, %v304
    %v308 = vmul.f32 %v300, %v304
    %v309 = vsel %vm81, %v305, 0.0
    %310 = vadd.xlane.f32.xlu0 %v309
    %v311 = vpop.xlane.xlu0 %310
    %v312 = vsel %vm81, %v306, 0.0
    %313 = vadd.xlane.f32.xlu0 %v312
    %v314 = vpop.xlane.xlu0 %313
    %v315 = vsel %vm81, %v307, 0.0
    %316 = vadd.xlane.f32.xlu0 %v315
    %v317 = vpop.xlane.xlu0 %316
    %v318 = vsel %vm81, %v308, 0.0
    %319 = vadd.xlane.f32.xlu0 %v318
    %v320 = vpop.xlane.xlu0 %319
    %v325 = vlaneseq
    %v326 = vand.u32 %v325, 127
    %v327 = vlaneseq
    %v328 = vshrl.u32 %v327, 7
    %v329 = vsub.s32 %v326, %v328
    %v330 = vrot.slane %v311, %v329
    %v331 = vadd.s32 %v326, 4294967288
    %v332 = vlaneseq
    %v333 = vshrl.u32 %v332, 7
    %v334 = vsub.s32 %v331, %v333
    %v335 = vrot.slane %v314, %v334
    %vm336 = vcmask 130112
    %v337 = vsel %vm336, %v335, %v330
    %v338 = vlaneseq
    %v339 = vshrl.u32 %v338, 7
    %v340 = vsub.s32 %v326, %v339
    %v341 = vrot.slane %v317, %v340
    %v342 = vlaneseq
    %v343 = vshrl.u32 %v342, 7
    %v344 = vsub.s32 %v331, %v343
    %v345 = vrot.slane %v320, %v344
    %v346 = vsel %vm336, %v345, %v341
    %vm347 = vcmask 1041409
    %v348 = vsel %vm347, %v346, %v337
    %vm350 = vcmask 123904
    %v351 = vsel %vm350, %v348, -inf
    %352 = vmax.xlane.f32.xlu0 %v351
    %v353 = vpop.xlane.xlu0 %352
    %v355 = vlaneseq
    %v356 = vshrl.u32 %v355, 7
    %v357 = vsub.s32 0, %v356
    %v358 = vrot.slane %v353, %v357
    %v359 = vlaneseq
    %v360 = vshrl.u32 %v359, 7
    %v361 = vsub.s32 1, %v360
    %v362 = vrot.slane %v353, %v361
    %v365 = vsub.f32 %v311, %v358
    %v366 = vsub.f32 %v314, %v358
    %v367 = vsub.f32 %v317, %v362
    %v368 = vsub.f32 %v320, %v362
    %v369 = vmul.f32 %v365, 1.442695
    %v370 = vpow.pop %v369
    %v371 = vmul.f32 %v366, 1.442695
    %v372 = vpow.pop %v371
    %v373 = vmul.f32 %v367, 1.442695
    %v374 = vpow.pop %v373
    %v375 = vmul.f32 %v368, 1.442695
    %v376 = vpow.pop %v375
    %381 = vset.pattern.permute.xlu0 0
    %382 = vperm.xlu0 %381, %v370
    %v383 = vpop.permute.xlu0 %382
    %384 = vset.pattern.permute.xlu0 0
    %385 = vperm.xlu0 %384, %v372
    %v386 = vpop.permute.xlu0 %385
    %387 = vset.pattern.permute.xlu0 0
    %388 = vperm.xlu0 %387, %v374
    %v389 = vpop.permute.xlu0 %388
    %390 = vset.pattern.permute.xlu0 0
    %391 = vperm.xlu0 %390, %v376
    %v392 = vpop.permute.xlu0 %391
    %v393 = vlaneseq
    %v394 = vshrl.u32 %v393, 7
    %v395 = vsub.s32 %v326, %v394
    %v396 = vrot.slane %v383, %v395
    %v397 = vlaneseq
    %v398 = vshrl.u32 %v397, 7
    %v399 = vsub.s32 %v331, %v398
    %v400 = vrot.slane %v386, %v399
    %v401 = vsel %vm336, %v400, %v396
    %v402 = vlaneseq
    %v403 = vshrl.u32 %v402, 7
    %v404 = vsub.s32 %v326, %v403
    %v405 = vrot.slane %v389, %v404
    %v406 = vlaneseq
    %v407 = vshrl.u32 %v406, 7
    %v408 = vsub.s32 %v331, %v407
    %v409 = vrot.slane %v392, %v408
    %v410 = vsel %vm336, %v409, %v405
    %v411 = vsel %vm347, %v410, %v401
    %v413 = vsel %vm350, %v411, 0.0
    %414 = vadd.xlane.f32.xlu0 %v413
    %v415 = vpop.xlane.xlu0 %414
    %v416 = vrcp.pop %v415
    %v418 = vlaneseq
    %v419 = vshrl.u32 %v418, 7
    %v420 = vsub.s32 0, %v419
    %v421 = vrot.slane %v416, %v420
    %v422 = vlaneseq
    %v423 = vshrl.u32 %v422, 7
    %v424 = vsub.s32 1, %v423
    %v425 = vrot.slane %v416, %v424
    %v428 = vmul.f32 %v370, %v421
    %v429 = vmul.f32 %v372, %v421
    %v430 = vmul.f32 %v374, %v425
    %v431 = vmul.f32 %v376, %v425
    %434 = vset.pattern.permute.xlu0 0
    %435 = vperm.xlu0 %434, %v428
    %v436 = vpop.permute.xlu0 %435
    %437 = vset.pattern.permute.xlu0 0
    %438 = vperm.xlu0 %437, %v429
    %v439 = vpop.permute.xlu0 %438
    %v440 = vlaneseq
    %v441 = vshrl.u32 %v440, 7
    %v442 = vsub.s32 %v326, %v441
    %v443 = vrot.slane %v436, %v442
    %v444 = vlaneseq
    %v445 = vshrl.u32 %v444, 7
    %v446 = vsub.s32 %v331, %v445
    %v447 = vrot.slane %v439, %v446
    %v448 = vsel %vm336, %v447, %v443
    %vm449 = vcmask 130048
    %v450 = vsel %vm449, %v448, 0
    %452 = vmatprep.subr.mxu0 0.0
    %453 = vmatpush1.msra.mxu0 %v65
    %454 = vmatprep.subr.mxu0 0.0
    %455 = vmatpush1.msra.mxu0 %v66
    %456 = vmatprep.subr.mxu0 0.0
    %457 = vmatpush1.msra.mxu0 0.0
    %458 = vmatprep.subr.mxu0 0.0
    %459 = vmatpush1.msra.mxu0 0.0
    %460 = vmatprep.subr.mxu0 0.0
    %461 = vmatpush1.msra.mxu0 0.0
    %462 = vmatprep.subr.mxu0 0.0
    %463 = vmatpush1.msra.mxu0 0.0
    %464 = vmatprep.subr.mxu0 0.0
    %465 = vmatpush1.msra.mxu0 0.0
    %466 = vmatprep.subr.mxu0 0.0
    %467 = vmatpush1.msra.mxu0 0.0
    %468 = vmatprep.subr.mxu0 0.0
    %469 = vmatpush1.msra.mxu0 0.0
    %470 = vmatprep.subr.mxu0 0.0
    %471 = vmatpush1.msra.mxu0 0.0
    %472 = vmatprep.subr.mxu0 0.0
    %473 = vmatpush1.msra.mxu0 0.0
    %474 = vmatprep.subr.mxu0 0.0
    %475 = vmatpush1.msra.mxu0 0.0
    %476 = vmatprep.subr.mxu0 0.0
    %477 = vmatpush1.msra.mxu0 0.0
    %478 = vmatprep.subr.mxu0 0.0
    %479 = vmatpush1.msra.mxu0 0.0
    %480 = vmatprep.subr.mxu0 0.0
    %481 = vmatpush1.msra.mxu0 0.0
    %482 = vmatprep.subr.mxu0 0.0
    %483 = vmatpush1.msra.mxu0 0.0
    %484 = vmatprep.subr.mxu0 0.0
    %485 = vmatpush1.msra.mxu0 0.0
    %486 = vmatprep.subr.mxu0 0.0
    %487 = vmatpush1.msra.mxu0 0.0
    %488 = vmatprep.subr.mxu0 0.0
    %489 = vmatpush1.msra.mxu0 0.0
    %490 = vmatprep.subr.mxu0 0.0
    %491 = vmatpush1.msra.mxu0 0.0
    %492 = vmatprep.subr.mxu0 0.0
    %493 = vmatpush1.msra.mxu0 0.0
    %494 = vmatprep.subr.mxu0 0.0
    %495 = vmatpush1.msra.mxu0 0.0
    %496 = vmatprep.subr.mxu0 0.0
    %497 = vmatpush1.msra.mxu0 0.0
    %498 = vmatprep.subr.mxu0 0.0
    %499 = vmatpush1.msra.mxu0 0.0
    %500 = vmatprep.subr.mxu0 0.0
    %501 = vmatpush1.msra.mxu0 0.0
    %502 = vmatprep.subr.mxu0 0.0
    %503 = vmatpush1.msra.mxu0 0.0
    %504 = vmatprep.subr.mxu0 0.0
    %505 = vmatpush1.msra.mxu0 0.0
    %506 = vmatprep.subr.mxu0 0.0
    %507 = vmatpush1.msra.mxu0 0.0
    %508 = vmatprep.subr.mxu0 0.0
    %509 = vmatpush1.msra.mxu0 0.0
    %510 = vmatprep.subr.mxu0 0.0
    %511 = vmatpush1.msra.mxu0 0.0
    %512 = vmatprep.subr.mxu0 0.0
    %513 = vmatpush1.msra.mxu0 0.0
    %514 = vmatprep.subr.mxu0 0.0
    %515 = vmatpush1.msra.mxu0 0.0
    %516 = vmatprep.mubr.f32.mxu0 0.0
    %517 = vmatmul.mubr.f32.gmra.mrb[0].mxu0 %v450
    %v518 = vpop.f32.mrb[0].mxu0
    %v519 = vadd.f32 0.0, %v518
    %v520 = vpop.f32.mrb[0].mxu0
    %521 = vdwg.mxu0
    %524 = vset.pattern.permute.xlu0 0
    %525 = vperm.xlu0 %524, %v430
    %v526 = vpop.permute.xlu0 %525
    %527 = vset.pattern.permute.xlu0 0
    %528 = vperm.xlu0 %527, %v431
    %v529 = vpop.permute.xlu0 %528
    %v530 = vlaneseq
    %v531 = vshrl.u32 %v530, 7
    %v532 = vsub.s32 %v326, %v531
    %v533 = vrot.slane %v526, %v532
    %v534 = vlaneseq
    %v535 = vshrl.u32 %v534, 7
    %v536 = vsub.s32 %v331, %v535
    %v537 = vrot.slane %v529, %v536
    %v538 = vsel %vm336, %v537, %v533
    %v539 = vsel %vm449, %v538, 0
    %541 = vmatprep.subr.mxu0 0.0
    %542 = vmatpush1.msra.mxu0 %v67
    %543 = vmatprep.subr.mxu0 0.0
    %544 = vmatpush1.msra.mxu0 %v68
    %545 = vmatprep.subr.mxu0 0.0
    %546 = vmatpush1.msra.mxu0 0.0
    %547 = vmatprep.subr.mxu0 0.0
    %548 = vmatpush1.msra.mxu0 0.0
    %549 = vmatprep.subr.mxu0 0.0
    %550 = vmatpush1.msra.mxu0 0.0
    %551 = vmatprep.subr.mxu0 0.0
    %552 = vmatpush1.msra.mxu0 0.0
    %553 = vmatprep.subr.mxu0 0.0
    %554 = vmatpush1.msra.mxu0 0.0
    %555 = vmatprep.subr.mxu0 0.0
    %556 = vmatpush1.msra.mxu0 0.0
    %557 = vmatprep.subr.mxu0 0.0
    %558 = vmatpush1.msra.mxu0 0.0
    %559 = vmatprep.subr.mxu0 0.0
    %560 = vmatpush1.msra.mxu0 0.0
    %561 = vmatprep.subr.mxu0 0.0
    %562 = vmatpush1.msra.mxu0 0.0
    %563 = vmatprep.subr.mxu0 0.0
    %564 = vmatpush1.msra.mxu0 0.0
    %565 = vmatprep.subr.mxu0 0.0
    %566 = vmatpush1.msra.mxu0 0.0
    %567 = vmatprep.subr.mxu0 0.0
    %568 = vmatpush1.msra.mxu0 0.0
    %569 = vmatprep.subr.mxu0 0.0
    %570 = vmatpush1.msra.mxu0 0.0
    %571 = vmatprep.subr.mxu0 0.0
    %572 = vmatpush1.msra.mxu0 0.0
    %573 = vmatprep.subr.mxu0 0.0
    %574 = vmatpush1.msra.mxu0 0.0
    %575 = vmatprep.subr.mxu0 0.0
    %576 = vmatpush1.msra.mxu0 0.0
    %577 = vmatprep.subr.mxu0 0.0
    %578 = vmatpush1.msra.mxu0 0.0
    %579 = vmatprep.subr.mxu0 0.0
    %580 = vmatpush1.msra.mxu0 0.0
    %581 = vmatprep.subr.mxu0 0.0
    %582 = vmatpush1.msra.mxu0 0.0
    %583 = vmatprep.subr.mxu0 0.0
    %584 = vmatpush1.msra.mxu0 0.0
    %585 = vmatprep.subr.mxu0 0.0
    %586 = vmatpush1.msra.mxu0 0.0
    %587 = vmatprep.subr.mxu0 0.0
    %588 = vmatpush1.msra.mxu0 0.0
    %589 = vmatprep.subr.mxu0 0.0
    %590 = vmatpush1.msra.mxu0 0.0
    %591 = vmatprep.subr.mxu0 0.0
    %592 = vmatpush1.msra.mxu0 0.0
    %593 = vmatprep.subr.mxu0 0.0
    %594 = vmatpush1.msra.mxu0 0.0
    %595 = vmatprep.subr.mxu0 0.0
    %596 = vmatpush1.msra.mxu0 0.0
    %597 = vmatprep.subr.mxu0 0.0
    %598 = vmatpush1.msra.mxu0 0.0
    %599 = vmatprep.subr.mxu0 0.0
    %600 = vmatpush1.msra.mxu0 0.0
    %601 = vmatprep.subr.mxu0 0.0
    %602 = vmatpush1.msra.mxu0 0.0
    %603 = vmatprep.subr.mxu0 0.0
    %604 = vmatpush1.msra.mxu0 0.0
    %605 = vmatprep.mubr.f32.mxu0 0.0
    %606 = vmatmul.mubr.f32.gmra.mrb[0].mxu0 %v539
    %v607 = vpop.f32.mrb[0].mxu0
    %v608 = vadd.f32 0.0, %v607
    %v609 = vpop.f32.mrb[0].mxu0
    %610 = vdwg.mxu0
    %vm611 = vcmask 253952
    %612 = vst.msk [vmem:[#allocation8] sm:$0x1] %vm611, %v519
    %613 = vst.msk [vmem:[#allocation8 + $0x1] sm:$0x1] %vm611, %v608
    %v614 = vsel %vm347, %v538, %v448
    %616 = vst.msk [vmem:[#allocation9] sm:$0x3] %vm350, %v614
    // Predicated region
    $region34: #{tpu_custom_call.1} parent=1 // pred_check
      _
    $region35: #{tpu_custom_call.1} parent=1 // pred_check_branch
      %618 = sbr.rel (0) target = $region37
    $region36: #{tpu_custom_call.1} parent=1 // pred_region
      %s620 = ssub.s32 32, 32
      %621 = vsyncadd [#allocation4], %s620
      %s622 = sshll.u32 [#allocation8], 4
      %s623 = int_to_ptr.vmem [resolvable:$true] %s622
      %628 = dma.vmem_to_hbm [thread:$0]  %s623, 32, %s5, [#allocation4], 16, 16, 1
    $region37: #{tpu_custom_call.1} parent=1 // pred_fallthru
      _
    // Predicated region
    $region38: #{tpu_custom_call.1} parent=1 // pred_check
      _
    $region39: #{tpu_custom_call.1} parent=1 // pred_check_branch
      %630 = sbr.rel (0) target = $region41
    $region40: #{tpu_custom_call.1} parent=1 // pred_region
      %s632 = ssub.s32 32, 32
      %633 = vsyncadd [#allocation10], %s632
      %s635 = sshll.u32 [#allocation9], 4
      %s636 = int_to_ptr.vmem [resolvable:$true] %s635
      %638 = dma.vmem_to_hbm [thread:$0]  %s636, 32, %s6, [#allocation10]
    $region41: #{tpu_custom_call.1} parent=1 // pred_fallthru
      _
    // Predicated region
    $region42: #{tpu_custom_call.1} parent=1 // pred_check
      _
    $region43: #{tpu_custom_call.1} parent=1 // pred_check_branch
      %640 = sbr.rel (0) target = $region45
    $region44: #{tpu_custom_call.1} parent=1 // pred_region
      %641 = dma.done [#allocation4], 32
    $region45: #{tpu_custom_call.1} parent=1 // pred_fallthru
      _
    // Predicated region
    $region46: #{tpu_custom_call.1} parent=1 // pred_check
      _
    $region47: #{tpu_custom_call.1} parent=1 // pred_check_branch
      %643 = sbr.rel (0) target = $region49
    $region48: #{tpu_custom_call.1} parent=1 // pred_region
      %644 = dma.done [#allocation10], 32
    $region49: #{tpu_custom_call.1} parent=1 // pred_fallthru
      _
    %645 = vsyncpa [#allocation3], 1
    %646 = vsyncpa [#allocation6], 1
    %647 = vsyncpa [#allocation4], 1
    %648 = vsyncpa [#allocation10], 1

</llo_original>
